<compile_context>
chip_gen: v7x
topology: tpu7x:2x2x1
jax: 0.10.0
libtpu: 0.0.40
codegen_flags: <defaults>
</compile_context>

<pallas_src>
import math

import jax
import jax.numpy as jnp
from jax.experimental import pallas as pl
from jax.experimental.pallas import tpu as pltpu  # noqa: F401  (TPU backend)


# ----------------------------- configuration --------------------------------
N_BATCH = 2          # batch size
C_IN = 4             # input channels (NCHW)
H = W = 16           # spatial dims
IN_FEATURES = 32     # backbone feature dim
NUM_INDUCING = 256   # RFF dimension (module default 1024; small for demo)
NUM_CLASSES = 10
KERNEL_SCALE = 1.0
INPUT_SCALE = 1.0 / math.sqrt(KERNEL_SCALE)
SCALE_RANDOM_FEATURES = False
RF_SCALE = math.sqrt(2.0 / float(NUM_INDUCING))
RIDGE_PENALTY = 1.0

# TPU layout padding: batch -> f32 sublane multiple, classes -> full lane.
N_PAD = 8
C_PAD = 128


# ------------------------------ Pallas kernels -------------------------------
def _rff_and_logits(feat_ref, w_ref, b_ref, beta_ref):
    """Shared RFF + GP-linear compute. Returns (logits_f32, phi_bf16)."""
    x = feat_ref[...].astype(jnp.bfloat16)          # input_scale folded into w
    z = jnp.dot(x, w_ref[...], preferred_element_type=jnp.float32) + b_ref[...]
    phi = jnp.cos(z)                                # f32 cos (v5e-safe)
    if SCALE_RANDOM_FEATURES:
        phi = RF_SCALE * phi
    phi_bf = phi.astype(jnp.bfloat16)
    logits = jnp.dot(phi_bf, beta_ref[...], preferred_element_type=jnp.float32)
    return logits, phi_bf


def sngp_logits_kernel(feat_ref, w_ref, b_ref, beta_ref, logits_ref):
    """return_cov=False path: logits only (phi stays on-chip)."""
    logits, _ = _rff_and_logits(feat_ref, w_ref, b_ref, beta_ref)
    logits_ref[...] = logits


def sngp_logits_cov_kernel(feat_ref, w_ref, b_ref, beta_ref, covf_ref,
                           logits_ref, cov_ref):
    """Fused return_cov=True path: logits + predictive covariance.

    feat:   [N_PAD, F]       f32
    w:      [F, M]           bf16 (input_scale folded in)
    b:      [1, M]           f32
    beta:   [M, C_PAD]       bf16 (classes zero-padded to 128 lanes)
    covf:   [M, M]           bf16 feature-space covariance
    logits: [N_PAD, C_PAD]   f32
    cov:    [N_PAD, N_PAD]   f32
    """
    logits, phi_bf = _rff_and_logits(feat_ref, w_ref, b_ref, beta_ref)
    logits_ref[...] = logits
    # cov = phi @ (covf @ phi.T) * ridge, reordered so all intermediates stay
    # [N, M] lane-dense and the MXU contracts the transposed operand directly.
    tmp = jnp.dot(phi_bf, covf_ref[...], preferred_element_type=jnp.float32)
    if RIDGE_PENALTY != 1.0:
        tmp = tmp * RIDGE_PENALTY
    cov_ref[...] = jax.lax.dot_general(
        tmp.astype(jnp.bfloat16), phi_bf,
        dimension_numbers=(((1,), (1,)), ((), ())),
        preferred_element_type=jnp.float32)


# ------------------------------ wrappers -------------------------------------
def _full_spec(shape):
    # Single full-array block (legal even when not (8,128)-aligned since the
    # block equals the full array).  Everything here fits trivially in VMEM.
    return pl.BlockSpec(shape, lambda: tuple(0 for _ in shape))


def _pad_rows(a, rows):
    n = a.shape[0]
    return a if n == rows else jnp.pad(a, ((0, rows - n), (0, 0)))


def sngp_head(features, params, return_cov):
    n, f = features.shape
    m = params["rff_w_t"].shape[1]
    feat_pad = _pad_rows(features, N_PAD)

    if not return_cov:
        logits_pad = pl.pallas_call(
            sngp_logits_kernel,
            out_shape=jax.ShapeDtypeStruct((N_PAD, C_PAD), jnp.float32),
            in_specs=[_full_spec((N_PAD, f)), _full_spec((f, m)),
                      _full_spec((1, m)), _full_spec((m, C_PAD))],
            out_specs=_full_spec((N_PAD, C_PAD)),
        )(feat_pad, params["rff_w_t"], params["rff_b"], params["beta_t_pad"])
        return logits_pad[:n, :NUM_CLASSES], None

    logits_pad, cov_pad = pl.pallas_call(
        sngp_logits_cov_kernel,
        out_shape=(jax.ShapeDtypeStruct((N_PAD, C_PAD), jnp.float32),
                   jax.ShapeDtypeStruct((N_PAD, N_PAD), jnp.float32)),
        in_specs=[_full_spec((N_PAD, f)), _full_spec((f, m)),
                  _full_spec((1, m)), _full_spec((m, C_PAD)),
                  _full_spec((m, m))],
        out_specs=(_full_spec((N_PAD, C_PAD)), _full_spec((N_PAD, N_PAD))),
    )(feat_pad, params["rff_w_t"], params["rff_b"], params["beta_t_pad"],
      params["cov_feature"])
    return logits_pad[:n, :NUM_CLASSES], cov_pad[:n, :n]


def backbone(x, proj_w):
    # Deterministic stand-in for `self.model(x, return_features=True)`:
    # global average pool over (H, W) then linear projection C -> IN_FEATURES.
    pooled = jnp.mean(x, axis=(2, 3))          # [N, C]
    return pooled @ proj_w                     # [N, IN_FEATURES]


def sngp_forward(x, params, return_cov=False):
    features = backbone(x, params["proj_w"])
    logits, cov = sngp_head(features, params, return_cov)
    if return_cov:
        return logits, cov
    return logits


def mean_field_logits(logits, cov, lmb=math.pi / 8):
    if lmb is None or lmb < 0:
        return logits
    variances = jnp.diag(cov).reshape(-1, 1)
    return logits / jnp.sqrt(1.0 + lmb * variances)


# ------------------------------ init -----------------------------------------
def init_params(key):
    k1, k2, k3, k4 = jax.random.split(key, 4)
    # RFF linear: weight ~ N(0, 1), bias ~ U(0, 2*pi)  (reset_parameters).
    rff_w = jax.random.normal(k1, (NUM_INDUCING, IN_FEATURES), jnp.float32)
    rff_b = jax.random.uniform(k2, (1, NUM_INDUCING), jnp.float32,
                               minval=0.0, maxval=2.0 * math.pi)
    # beta: xavier_normal, no bias; zero-padded to a lane-dense class dim.
    std = math.sqrt(2.0 / (NUM_INDUCING + NUM_CLASSES))
    beta = std * jax.random.normal(k3, (NUM_CLASSES, NUM_INDUCING), jnp.float32)
    beta_t_pad = jnp.zeros((NUM_INDUCING, C_PAD), jnp.float32)
    beta_t_pad = beta_t_pad.at[:, :NUM_CLASSES].set(beta.T)
    # Backbone projection (stand-in model).
    proj_w = 0.1 * jax.random.normal(k4, (C_IN, IN_FEATURES), jnp.float32)
    # Eval-mode precision matrix is the un-updated ridge * I, so its Cholesky
    # inverse (the cached `covariance_matrix`) is analytically I / ridge,
    # computed ONCE here, outside the forward hot path.
    # TODO(synk): a trained/updated precision matrix would need a Cholesky
    # factorization + solve, which has no clean Pallas equivalent (plain JAX).
    cov_feature = jnp.eye(NUM_INDUCING, dtype=jnp.float32) / RIDGE_PENALTY
    # MXU operands stored as bf16 (f32 accumulation inside the kernel);
    # input_scale is folded into the RFF weight.
    return {
        "rff_w_t": (rff_w.T * INPUT_SCALE).astype(jnp.bfloat16),  # [F, M]
        "rff_b": rff_b,                                           # [1, M] f32
        "beta_t_pad": beta_t_pad.astype(jnp.bfloat16),            # [M, C_PAD]
        "proj_w": proj_w,                                         # [C_IN, F]
        "cov_feature": cov_feature.astype(jnp.bfloat16),          # [M, M]
    }


# ------------------------------ main ------------------------------------------
if __name__ == "__main__":
    key = jax.random.PRNGKey(0)
    kx, kp = jax.random.split(key)
    x = jax.random.normal(kx, (N_BATCH, C_IN, H, W), jnp.float32)  # NCHW
    params = init_params(kp)

    logits_only = sngp_forward(x, params, return_cov=False)
    logits, cov = sngp_forward(x, params, return_cov=True)
    scaled = mean_field_logits(logits, cov)
    jax.block_until_ready((logits_only, logits, cov, scaled))

    # Pure-JAX reference mirroring the kernel's bf16-operand / f32-accumulate
    # matmul quantization.
    feats = backbone(x, params["proj_w"])
    x_bf = feats.astype(jnp.bfloat16)
    z_ref = (jnp.dot(x_bf, params["rff_w_t"],
                     preferred_element_type=jnp.float32) + params["rff_b"])
    phi_ref = jnp.cos(z_ref)
    if SCALE_RANDOM_FEATURES:
        phi_ref = RF_SCALE * phi_ref
    phi_bf = phi_ref.astype(jnp.bfloat16)
    logits_ref = jnp.dot(phi_bf, params["beta_t_pad"],
                         preferred_element_type=jnp.float32)[:, :NUM_CLASSES]
    tmp_ref = jnp.dot(phi_bf, params["cov_feature"],
                      preferred_element_type=jnp.float32) * RIDGE_PENALTY
    cov_ref = jnp.dot(tmp_ref.astype(jnp.bfloat16), phi_bf.T,
                      preferred_element_type=jnp.float32)

    assert logits.shape == (N_BATCH, NUM_CLASSES)
    assert cov.shape == (N_BATCH, N_BATCH)
    assert jnp.allclose(logits_only, logits_ref, atol=1e-2), "logits-only mismatch"
    assert jnp.allclose(logits, logits_ref, atol=1e-2), "logits mismatch"
    assert jnp.allclose(cov, cov_ref, rtol=1e-3, atol=1e-2), "cov mismatch"

    print("KERNEL_OK")
</pallas_src>

<mosaic_0001>
module attributes {stable_mosaic.version = 11 : i64} {
  func.func @sngp_logits_kernel(%arg0: memref<8x32xf32, #tpu.memory_space<vmem>>, %arg1: memref<32x256xbf16, #tpu.memory_space<vmem>>, %arg2: memref<1x256xf32, #tpu.memory_space<vmem>>, %arg3: memref<256x128xbf16, #tpu.memory_space<vmem>>, %arg4: memref<8x128xf32, #tpu.memory_space<vmem>>) attributes {dimension_semantics = [], scalar_prefetch = 0 : i64, scratch_operands = 0 : i64, tpu.core_type = #tpu.core_type<tc>} {
    %c0 = arith.constant 0 : index
    %c0_0 = arith.constant 0 : index
    %0 = vector.load %arg0[%c0, %c0_0] : memref<8x32xf32, #tpu.memory_space<vmem>>, vector<8x32xf32>
    %1 = arith.truncf %0 : vector<8x32xf32> to vector<8x32xbf16>
    %c0_1 = arith.constant 0 : index
    %c0_2 = arith.constant 0 : index
    %2 = vector.load %arg1[%c0_1, %c0_2] : memref<32x256xbf16, #tpu.memory_space<vmem>>, vector<32x256xbf16>
    %cst = arith.constant dense<0.000000e+00> : vector<8x256xf32>
    %3 = tpu.matmul %1, %2, %cst {dimension_numbers = #tpu.dot_dimension_numbers<[1], [0], [0], [1], [0, 0, 1, 1], [], []>} : vector<8x32xbf16>, vector<32x256xbf16>, vector<8x256xf32> -> vector<8x256xf32>
    %c0_3 = arith.constant 0 : index
    %c0_4 = arith.constant 0 : index
    %4 = vector.load %arg2[%c0_3, %c0_4] : memref<1x256xf32, #tpu.memory_space<vmem>>, vector<1x256xf32>
    %5 = vector.broadcast %4 : vector<1x256xf32> to vector<8x256xf32>
    %6 = arith.addf %3, %5 : vector<8x256xf32>
    %7 = math.cos %6 : vector<8x256xf32>
    %8 = arith.truncf %7 : vector<8x256xf32> to vector<8x256xbf16>
    %c0_5 = arith.constant 0 : index
    %c0_6 = arith.constant 0 : index
    %9 = vector.load %arg3[%c0_5, %c0_6] : memref<256x128xbf16, #tpu.memory_space<vmem>>, vector<256x128xbf16>
    %cst_7 = arith.constant dense<0.000000e+00> : vector<8x128xf32>
    %10 = tpu.matmul %8, %9, %cst_7 {dimension_numbers = #tpu.dot_dimension_numbers<[1], [0], [0], [1], [0, 0, 1, 1], [], []>} : vector<8x256xbf16>, vector<256x128xbf16>, vector<8x128xf32> -> vector<8x128xf32>
    %c0_8 = arith.constant 0 : index
    %c0_9 = arith.constant 0 : index
    %11 = vector.load %arg4[%c0_8, %c0_9] : memref<8x128xf32, #tpu.memory_space<vmem>>, vector<8x128xf32>
    tpu.vector_store %arg4[%c0_8, %c0_9], %10 {strides = array<i32>} : memref<8x128xf32, #tpu.memory_space<vmem>>, vector<8x128xf32>,
    return
  }
}

</mosaic_0001>

<llo_original>
// kernel: tpu_custom_call.1
$region0: #{tpu_custom_call.1}
  #allocation0 [shape = 'u32[]', space=smem, size = 0x4, offset = 0x4, fixed_abs, tag = 'smem constant byte address 0x4 - core index']
  #allocation1 [shape = 'u32[144,128]{1,0:T(1,128)}', space=vmem, size = 0x12000, scoped, tag = 'internal scratch']
  %s0 = inlined_call_operand.hbm [shape: f32[8,32], index: 0, kind: input, shape index: {}]
  %s1 = inlined_call_operand.hbm [shape: bf16[32,256], index: 1, kind: input, shape index: {}]
  %s2 = inlined_call_operand.vmem [shape: f32[1,256], index: 2, kind: input, shape index: {}]
  %s3 = inlined_call_operand.hbm [shape: bf16[256,128], index: 3, kind: input, shape index: {}]
  %s4 = inlined_call_operand.hbm [shape: f32[8,128], index: 4, kind: output, shape index: {}]
  %s5 = sld [smem:[#allocation0]]
  $region38: #{tpu_custom_call.1} parent=0
    _
  %s7 = ssub.s32 1, %s5
  %s8 = scalar_select 0, %s7, %s5
  $region1: #{tpu_custom_call.1} parent=0
    #allocation2 [shape = 'u8[4096]{0}', space=vmem, size = 0x1000, scoped, tag = 'input window, operand 0, single buffered']
    #allocation3 [shape = 's32[1]{0}', space=sflag, size = 0x4, scoped, tag = 'scoped memory for tpu_custom_call.1']
    #allocation4 [shape = 's32[1]{0}', space=sflag, size = 0x4, scoped, tag = 'scoped memory for tpu_custom_call.1']
    #allocation5 [shape = 'u8[16384]{0}', space=vmem, size = 0x4000, scoped, tag = 'input window, operand 1, single buffered']
    #allocation6 [shape = 's32[1]{0}', space=sflag, size = 0x4, scoped, tag = 'scoped memory for tpu_custom_call.1']
    #allocation7 [shape = 'u8[65536]{0}', space=vmem, size = 0x10000, scoped, tag = 'input window, operand 3, single buffered']
    #allocation8 [shape = 'u8[4096]{0}', space=vmem, size = 0x1000, scoped, tag = 'output window, operand 0, single buffered']
    %9 = vsyncpa [#allocation3], 0
    %10 = vsyncpa [#allocation6], 0
    %11 = vsyncpa [#allocation4], 0
    // Predicated region
    $region2: #{tpu_custom_call.1} parent=1 // pred_check
      _
    $region3: #{tpu_custom_call.1} parent=1 // pred_check_branch
      %13 = sbr.rel (0) target = $region5
    $region4: #{tpu_custom_call.1} parent=1 // pred_region
      %s15 = ssub.s32 128, 128
      %16 = vsyncadd [#allocation3], %s15
      %s18 = sshll.u32 [#allocation2], 4
      %s19 = int_to_ptr.vmem [resolvable:$true] %s18
      %21 = dma.hbm_to_vmem [thread:$0]  %s0, 128, %s19, [#allocation3]
    $region5: #{tpu_custom_call.1} parent=1 // pred_fallthru
      _
    // Predicated region
    $region6: #{tpu_custom_call.1} parent=1 // pred_check
      _
    $region7: #{tpu_custom_call.1} parent=1 // pred_check_branch
      %23 = sbr.rel (0) target = $region9
    $region8: #{tpu_custom_call.1} parent=1 // pred_region
      %s25 = ssub.s32 512, 512
      %26 = vsyncadd [#allocation6], %s25
      %s27 = sshll.u32 [#allocation5], 4
      %s28 = int_to_ptr.vmem [resolvable:$true] %s27
      %33 = dma.hbm_to_vmem [thread:$0]  %s1, 512, %s28, [#allocation6], 128, 128, 8
    $region9: #{tpu_custom_call.1} parent=1 // pred_fallthru
      _
    // Predicated region
    $region10: #{tpu_custom_call.1} parent=1 // pred_check
      _
    $region11: #{tpu_custom_call.1} parent=1 // pred_check_branch
      %35 = sbr.rel (0) target = $region13
    $region12: #{tpu_custom_call.1} parent=1 // pred_region
      _
    $region13: #{tpu_custom_call.1} parent=1 // pred_fallthru
      _
    // Predicated region
    $region14: #{tpu_custom_call.1} parent=1 // pred_check
      _
    $region15: #{tpu_custom_call.1} parent=1 // pred_check_branch
      %37 = sbr.rel (0) target = $region17
    $region16: #{tpu_custom_call.1} parent=1 // pred_region
      %s39 = ssub.s32 2048, 2048
      %40 = vsyncadd [#allocation6], %s39
      %s41 = sshll.u32 [#allocation7], 4
      %s42 = int_to_ptr.vmem [resolvable:$true] %s41
      %47 = dma.hbm_to_vmem [thread:$0]  %s3, 2048, %s42, [#allocation6], 64, 64, 4
    $region17: #{tpu_custom_call.1} parent=1 // pred_fallthru
      _
    // Predicated region
    $region18: #{tpu_custom_call.1} parent=1 // pred_check
      _
    $region19: #{tpu_custom_call.1} parent=1 // pred_check_branch
      %49 = sbr.rel (0) target = $region21
    $region20: #{tpu_custom_call.1} parent=1 // pred_region
      %50 = dma.done [#allocation3], 128
    $region21: #{tpu_custom_call.1} parent=1 // pred_fallthru
      _
    // Predicated region
    $region22: #{tpu_custom_call.1} parent=1 // pred_check
      _
    $region23: #{tpu_custom_call.1} parent=1 // pred_check_branch
      %52 = sbr.rel (0) target = $region25
    $region24: #{tpu_custom_call.1} parent=1 // pred_region
      %53 = dma.done [#allocation6], 512
    $region25: #{tpu_custom_call.1} parent=1 // pred_fallthru
      _
    // Predicated region
    $region26: #{tpu_custom_call.1} parent=1 // pred_check
      _
    $region27: #{tpu_custom_call.1} parent=1 // pred_check_branch
      %55 = sbr.rel (0) target = $region29
    $region28: #{tpu_custom_call.1} parent=1 // pred_region
      %56 = dma.done [#allocation6], 2048
    $region29: #{tpu_custom_call.1} parent=1 // pred_fallthru
      _
    %v58 = vld [vmem:[#allocation2] sm:$0xff]
    %v59 = vpack.c.bf16 %v58, %v58
    %v60 = vld [vmem:[#allocation5] sm:$0xff]
    %v61 = vld [vmem:[#allocation5 + $0x8] sm:$0xff]
    %v62 = vld [vmem:[#allocation5 + $0x10] sm:$0xff]
    %v63 = vld [vmem:[#allocation5 + $0x18] sm:$0xff]
    %v64 = vld [vmem:[%s2] sm:$0x3]
    %v66 = vlaneseq
    %v67 = vshrl.u32 %v66, 7
    %v68 = vsub.s32 0, %v67
    %v69 = vrot.slane %v64, %v68
    %v70 = vlaneseq
    %v71 = vshrl.u32 %v70, 7
    %v72 = vsub.s32 1, %v71
    %v73 = vrot.slane %v64, %v72
    %v80 = vunpack.c.l.b16 %v60
    %v81 = vunpack.c.h.b16 %v60
    %v82 = vunpack.c.l.b16 %v61
    %v83 = vunpack.c.h.b16 %v61
    %v84 = vunpack.c.l.b16 %v62
    %v85 = vunpack.c.h.b16 %v62
    %v86 = vunpack.c.l.b16 %v63
    %v87 = vunpack.c.h.b16 %v63
    %v88 = vpack.c.b16 %v82, %v80
    %v89 = vpack.c.b16 %v83, %v81
    %v90 = vpack.c.b16 %v86, %v84
    %v91 = vpack.c.b16 %v87, %v85
    %vm96 = vcmask 261120
    %v98 = vsel %vm96, %v59, 0
    %100 = vmatprep.subr.bf16.mxu0 %v89
    %101 = vmatpush1.bf16.msra.mxu0 %v88
    %102 = vmatprep.subr.bf16.mxu0 %v91
    %103 = vmatpush1.bf16.msra.mxu0 %v90
    %104 = vmatprep.subr.bf16.mxu0 0
    %105 = vmatpush1.bf16.msra.mxu0 0
    %106 = vmatprep.subr.bf16.mxu0 0
    %107 = vmatpush1.bf16.msra.mxu0 0
    %108 = vmatprep.subr.bf16.mxu0 0
    %109 = vmatpush1.bf16.msra.mxu0 0
    %110 = vmatprep.subr.bf16.mxu0 0
    %111 = vmatpush1.bf16.msra.mxu0 0
    %112 = vmatprep.subr.bf16.mxu0 0
    %113 = vmatpush1.bf16.msra.mxu0 0
    %114 = vmatprep.subr.bf16.mxu0 0
    %115 = vmatpush1.bf16.msra.mxu0 0
    %116 = vmatprep.subr.bf16.mxu0 0
    %117 = vmatpush1.bf16.msra.mxu0 0
    %118 = vmatprep.subr.bf16.mxu0 0
    %119 = vmatpush1.bf16.msra.mxu0 0
    %120 = vmatprep.subr.bf16.mxu0 0
    %121 = vmatpush1.bf16.msra.mxu0 0
    %122 = vmatprep.subr.bf16.mxu0 0
    %123 = vmatpush1.bf16.msra.mxu0 0
    %124 = vmatprep.subr.bf16.mxu0 0
    %125 = vmatpush1.bf16.msra.mxu0 0
    %126 = vmatprep.subr.bf16.mxu0 0
    %127 = vmatpush1.bf16.msra.mxu0 0
    %128 = vmatprep.subr.bf16.mxu0 0
    %129 = vmatpush1.bf16.msra.mxu0 0
    %130 = vmatprep.subr.bf16.mxu0 0
    %131 = vmatpush1.bf16.msra.mxu0 0
    %132 = vmatprep.mubr.bf16.mxu0 0
    %133 = vmatmul.mubr.bf16.gmra.mrb[0].mxu0 %v98
    %v134 = vpop.f32.mrb[0].mxu0
    %v135 = vadd.f32 %v69, %v134
    %v136 = vpop.f32.mrb[0].mxu0
    %v137 = vadd.f32 %v73, %v136
    %v138 = vpop.f32.mrb[0].mxu0
    %v139 = vpop.f32.mrb[0].mxu0
    %140 = vdwg.mxu0
    %v141 = vand.u32 2147483647, %v135
    %vm142 = vcmp.le.f32.partialorder %v141, 0.7853982
    %vm143 = vcmp.lt.s32.totalorder %v135, 0
    %v144 = vand.u32 %v135, 2139095040
    %v145 = vshrl.u32 %v144, 23
    %v146 = vsub.s32 %v145, 127
    %v147 = vand.u32 2147483647, %v135
    %v148 = vand.u32 %v147, 8388607
    %v149 = vor.u32 %v148, 8388608
    %v150 = vsub.s32 0, %v149
    %v151 = vadd.s32 %v146, 1
    %vm152 = vcmp.gt.s32.totalorder %v151, 0
    %v153 = vsel %vm152, %v151, 0
    %v154 = vshrl.u32 %v153, 5
    %v155 = vand.u32 %v153, 31
    %v156 = vsub.s32 32, %v155
    %v157 = vshrl.u32 683565275, %v156
    %v158 = vshll.u32 683565275, %v155
    %v159 = vshrl.u32 2475754826, %v156
    %v160 = vor.u32 %v158, %v159
    %v161 = vshll.u32 2475754826, %v155
    %v162 = vshrl.u32 2131351028, %v156
    %v163 = vor.u32 %v161, %v162
    %v164 = vshll.u32 2131351028, %v155
    %v165 = vshrl.u32 2102212464, %v156
    %v166 = vor.u32 %v164, %v165
    %v167 = vshll.u32 2102212464, %v155
    %v168 = vshrl.u32 920167782, %v156
    %v169 = vor.u32 %v167, %v168
    %v170 = vshll.u32 920167782, %v155
    %v171 = vshrl.u32 1326507024, %v156
    %v172 = vor.u32 %v170, %v171
    %vm173 = vcmp.lt.s32.totalorder %v154, 1
    %vm174 = vcmp.lt.s32.totalorder %v154, 2
    %vm175 = vcmp.lt.s32.totalorder %v154, 3
    %vm176 = vcmp.lt.s32.totalorder %v154, 4
    %v177 = vsel %vm173, %v157, %v160
    %v178 = vsel %vm176, %v166, 2102212464
    %v179 = vsel %vm175, %v163, %v178
    %v180 = vsel %vm174, %v177, %v179
    %v181 = vsel %vm173, %v160, %v163
    %v182 = vsel %vm176, %v169, 920167782
    %v183 = vsel %vm175, %v166, %v182
    %v184 = vsel %vm174, %v181, %v183
    %v185 = vsel %vm173, %v163, %v166
    %v186 = vsel %vm176, %v172, 1326507024
    %v187 = vsel %vm175, %v169, %v186
    %v188 = vsel %vm174, %v185, %v187
    %v189 = vshll.u32 %v149, 8
    %v190 = vmul.u32.u64.compose %v189, %v188
    %v191 = vextract.low.u32 %v190
    %v192 = vextract.high.u32 %v190
    %v193 = vmul.u32.u64.compose %v189, %v184
    %v194 = vextract.low.u32 %v193
    %v195 = vextract.high.u32 %v193
    %v196 = vmul.u32 %v189, %v180
    %v197 = vadd.s32 %v192, %v194
    %vm198 = vc.u32 %v192, %v194
    %v199 = vadd.s32 %v195, 1
    %v200 = vsel %vm198, %v199, %v195
    %v201 = vadd.s32 %v196, %v200
    %v202 = vadd.s32 %v201, 536870912
    %v203 = vshrl.u32 %v202, 30
    %v204 = vshll.u32 %v203, 30
    %v205 = vsub.s32 %v201, %v204
    %vm206 = vcmp.lt.s32.totalorder %v205, 0
    %v207 = vsub.s32 0, %v205
    %v208 = vsel %vm206, %v207, %v205
    %v209 = vclz %v208
    %v210 = vsub.s32 %v209, 2
    %vm211 = vcmp.gt.s32.totalorder 0, %v210
    %v212 = vsel %vm211, 0, %v210
    %v213 = vsub.s32 32, %v212
    %v214 = vshll.u32 %v205, %v212
    %v215 = vshrl.u32 %v197, %v213
    %v216 = vor.u32 %v214, %v215
    %v217 = vsub.s32 4294967266, %v212
    %v218 = vadd.s32 %v217, 127
    %v219 = vshll.u32 %v218, 23
    %v220 = vor.u32 4788187, %v219
    %v221 = vand.u32 2147483647, %v220
    %v223 = vcvt.s32.f32 %v216
    %v224 = vmul.f32 %v223, %v221
    %v225 = vxor.u32 %v224, 2147483648
    %v226 = vsel %vm143, %v225, %v224
    %v227 = vsub.s32 4, %v203
    %v228 = vsel %vm143, %v227, %v203
    %v229 = vsel %vm142, %v135, %v226
    %v230 = vsel %vm142, 0, %v228
    %v231 = vcosq.f32.pop %v229
    %v232 = vsinq.f32.pop %v229
    %vm233 = vweird.f32 %v135
    %v234 = vand.u32 %v230, 3
    %vm235 = vcmp.lt.s32.totalorder %v234, 2
    %vm236 = vcmp.eq.s32.totalorder %v234, 0
    %v237 = vxor.u32 %v232, 2147483648
    %v238 = vsel %vm236, %v231, %v237
    %vm239 = vcmp.eq.s32.totalorder %v234, 2
    %v240 = vxor.u32 %v231, 2147483648
    %v241 = vsel %vm239, %v240, %v232
    %v242 = vsel %vm235, %v238, %v241
    %v243 = vsel %vm233, nan, %v242
    %v244 = vand.u32 2147483647, %v137
    %vm245 = vcmp.le.f32.partialorder %v244, 0.7853982
    %vm246 = vcmp.lt.s32.totalorder %v137, 0
    %v247 = vand.u32 %v137, 2139095040
    %v248 = vshrl.u32 %v247, 23
    %v249 = vsub.s32 %v248, 127
    %v250 = vand.u32 2147483647, %v137
    %v251 = vand.u32 %v250, 8388607
    %v252 = vor.u32 %v251, 8388608
    %v253 = vsub.s32 0, %v252
    %v254 = vadd.s32 %v249, 1
    %vm255 = vcmp.gt.s32.totalorder %v254, 0
    %v256 = vsel %vm255, %v254, 0
    %v257 = vshrl.u32 %v256, 5
    %v258 = vand.u32 %v256, 31
    %v259 = vsub.s32 32, %v258
    %v260 = vshrl.u32 683565275, %v259
    %v261 = vshll.u32 683565275, %v258
    %v262 = vshrl.u32 2475754826, %v259
    %v263 = vor.u32 %v261, %v262
    %v264 = vshll.u32 2475754826, %v258
    %v265 = vshrl.u32 2131351028, %v259
    %v266 = vor.u32 %v264, %v265
    %v267 = vshll.u32 2131351028, %v258
    %v268 = vshrl.u32 2102212464, %v259
    %v269 = vor.u32 %v267, %v268
    %v270 = vshll.u32 2102212464, %v258
    %v271 = vshrl.u32 920167782, %v259
    %v272 = vor.u32 %v270, %v271
    %v273 = vshll.u32 920167782, %v258
    %v274 = vshrl.u32 1326507024, %v259
    %v275 = vor.u32 %v273, %v274
    %vm276 = vcmp.lt.s32.totalorder %v257, 1
    %vm277 = vcmp.lt.s32.totalorder %v257, 2
    %vm278 = vcmp.lt.s32.totalorder %v257, 3
    %vm279 = vcmp.lt.s32.totalorder %v257, 4
    %v280 = vsel %vm276, %v260, %v263
    %v281 = vsel %vm279, %v269, 2102212464
    %v282 = vsel %vm278, %v266, %v281
    %v283 = vsel %vm277, %v280, %v282
    %v284 = vsel %vm276, %v263, %v266
    %v285 = vsel %vm279, %v272, 920167782
    %v286 = vsel %vm278, %v269, %v285
    %v287 = vsel %vm277, %v284, %v286
    %v288 = vsel %vm276, %v266, %v269
    %v289 = vsel %vm279, %v275, 1326507024
    %v290 = vsel %vm278, %v272, %v289
    %v291 = vsel %vm277, %v288, %v290
    %v292 = vshll.u32 %v252, 8
    %v293 = vmul.u32.u64.compose %v292, %v291
    %v294 = vextract.low.u32 %v293
    %v295 = vextract.high.u32 %v293
    %v296 = vmul.u32.u64.compose %v292, %v287
    %v297 = vextract.low.u32 %v296
    %v298 = vextract.high.u32 %v296
    %v299 = vmul.u32 %v292, %v283
    %v300 = vadd.s32 %v295, %v297
    %vm301 = vc.u32 %v295, %v297
    %v302 = vadd.s32 %v298, 1
    %v303 = vsel %vm301, %v302, %v298
    %v304 = vadd.s32 %v299, %v303
    %v305 = vadd.s32 %v304, 536870912
    %v306 = vshrl.u32 %v305, 30
    %v307 = vshll.u32 %v306, 30
    %v308 = vsub.s32 %v304, %v307
    %vm309 = vcmp.lt.s32.totalorder %v308, 0
    %v310 = vsub.s32 0, %v308
    %v311 = vsel %vm309, %v310, %v308
    %v312 = vclz %v311
    %v313 = vsub.s32 %v312, 2
    %vm314 = vcmp.gt.s32.totalorder 0, %v313
    %v315 = vsel %vm314, 0, %v313
    %v316 = vsub.s32 32, %v315
    %v317 = vshll.u32 %v308, %v315
    %v318 = vshrl.u32 %v300, %v316
    %v319 = vor.u32 %v317, %v318
    %v320 = vsub.s32 4294967266, %v315
    %v321 = vadd.s32 %v320, 127
    %v322 = vshll.u32 %v321, 23
    %v323 = vor.u32 4788187, %v322
    %v324 = vand.u32 2147483647, %v323
    %v326 = vcvt.s32.f32 %v319
    %v327 = vmul.f32 %v326, %v324
    %v328 = vxor.u32 %v327, 2147483648
    %v329 = vsel %vm246, %v328, %v327
    %v330 = vsub.s32 4, %v306
    %v331 = vsel %vm246, %v330, %v306
    %v332 = vsel %vm245, %v137, %v329
    %v333 = vsel %vm245, 0, %v331
    %v334 = vcosq.f32.pop %v332
    %v335 = vsinq.f32.pop %v332
    %vm336 = vweird.f32 %v137
    %v337 = vand.u32 %v333, 3
    %vm338 = vcmp.lt.s32.totalorder %v337, 2
    %vm339 = vcmp.eq.s32.totalorder %v337, 0
    %v340 = vxor.u32 %v335, 2147483648
    %v341 = vsel %vm339, %v334, %v340
    %vm342 = vcmp.eq.s32.totalorder %v337, 2
    %v343 = vxor.u32 %v334, 2147483648
    %v344 = vsel %vm342, %v343, %v335
    %v345 = vsel %vm338, %v341, %v344
    %v346 = vsel %vm336, nan, %v345
    %v347 = vpack.c.bf16 %v243, %v243
    %v348 = vpack.c.bf16 %v346, %v346
    %v349 = vld [vmem:[#allocation7] sm:$0xf]
    %v350 = vld [vmem:[#allocation7 + $0x4] sm:$0xf]
    %v351 = vld [vmem:[#allocation7 + $0x8] sm:$0xf]
    %v352 = vld [vmem:[#allocation7 + $0xc] sm:$0xf]
    %v353 = vld [vmem:[#allocation7 + $0x10] sm:$0xf]
    %v354 = vld [vmem:[#allocation7 + $0x14] sm:$0xf]
    %v355 = vld [vmem:[#allocation7 + $0x18] sm:$0xf]
    %v356 = vld [vmem:[#allocation7 + $0x1c] sm:$0xf]
    %v357 = vld [vmem:[#allocation7 + $0x20] sm:$0xf]
    %v358 = vld [vmem:[#allocation7 + $0x24] sm:$0xf]
    %v359 = vld [vmem:[#allocation7 + $0x28] sm:$0xf]
    %v360 = vld [vmem:[#allocation7 + $0x2c] sm:$0xf]
    %v361 = vld [vmem:[#allocation7 + $0x30] sm:$0xf]
    %v362 = vld [vmem:[#allocation7 + $0x34] sm:$0xf]
    %v363 = vld [vmem:[#allocation7 + $0x38] sm:$0xf]
    %v364 = vld [vmem:[#allocation7 + $0x3c] sm:$0xf]
    %v365 = vld [vmem:[#allocation7 + $0x40] sm:$0xf]
    %v366 = vld [vmem:[#allocation7 + $0x44] sm:$0xf]
    %v367 = vld [vmem:[#allocation7 + $0x48] sm:$0xf]
    %v368 = vld [vmem:[#allocation7 + $0x4c] sm:$0xf]
    %v369 = vld [vmem:[#allocation7 + $0x50] sm:$0xf]
    %v370 = vld [vmem:[#allocation7 + $0x54] sm:$0xf]
    %v371 = vld [vmem:[#allocation7 + $0x58] sm:$0xf]
    %v372 = vld [vmem:[#allocation7 + $0x5c] sm:$0xf]
    %v373 = vld [vmem:[#allocation7 + $0x60] sm:$0xf]
    %v374 = vld [vmem:[#allocation7 + $0x64] sm:$0xf]
    %v375 = vld [vmem:[#allocation7 + $0x68] sm:$0xf]
    %v376 = vld [vmem:[#allocation7 + $0x6c] sm:$0xf]
    %v377 = vld [vmem:[#allocation7 + $0x70] sm:$0xf]
    %v378 = vld [vmem:[#allocation7 + $0x74] sm:$0xf]
    %v379 = vld [vmem:[#allocation7 + $0x78] sm:$0xf]
    %v380 = vld [vmem:[#allocation7 + $0x7c] sm:$0xf]
    %v413 = vunpack.c.l.b16 %v349
    %v414 = vunpack.c.l.b16 %v350
    %v415 = vunpack.c.l.b16 %v351
    %v416 = vunpack.c.l.b16 %v352
    %v417 = vunpack.c.l.b16 %v353
    %v418 = vunpack.c.l.b16 %v354
    %v419 = vunpack.c.l.b16 %v355
    %v420 = vunpack.c.l.b16 %v356
    %v421 = vunpack.c.l.b16 %v357
    %v422 = vunpack.c.l.b16 %v358
    %v423 = vunpack.c.l.b16 %v359
    %v424 = vunpack.c.l.b16 %v360
    %v425 = vunpack.c.l.b16 %v361
    %v426 = vunpack.c.l.b16 %v362
    %v427 = vunpack.c.l.b16 %v363
    %v428 = vunpack.c.l.b16 %v364
    %v429 = vunpack.c.l.b16 %v365
    %v430 = vunpack.c.l.b16 %v366
    %v431 = vunpack.c.l.b16 %v367
    %v432 = vunpack.c.l.b16 %v368
    %v433 = vunpack.c.l.b16 %v369
    %v434 = vunpack.c.l.b16 %v370
    %v435 = vunpack.c.l.b16 %v371
    %v436 = vunpack.c.l.b16 %v372
    %v437 = vunpack.c.l.b16 %v373
    %v438 = vunpack.c.l.b16 %v374
    %v439 = vunpack.c.l.b16 %v375
    %v440 = vunpack.c.l.b16 %v376
    %v441 = vunpack.c.l.b16 %v377
    %v442 = vunpack.c.l.b16 %v378
    %v443 = vunpack.c.l.b16 %v379
    %v444 = vunpack.c.l.b16 %v380
    %v445 = vpack.c.b16 %v414, %v413
    %v446 = vpack.c.b16 %v416, %v415
    %v447 = vpack.c.b16 %v418, %v417
    %v448 = vpack.c.b16 %v420, %v419
    %v449 = vpack.c.b16 %v422, %v421
    %v450 = vpack.c.b16 %v424, %v423
    %v451 = vpack.c.b16 %v426, %v425
    %v452 = vpack.c.b16 %v428, %v427
    %v453 = vpack.c.b16 %v430, %v429
    %v454 = vpack.c.b16 %v432, %v431
    %v455 = vpack.c.b16 %v434, %v433
    %v456 = vpack.c.b16 %v436, %v435
    %v457 = vpack.c.b16 %v438, %v437
    %v458 = vpack.c.b16 %v440, %v439
    %v459 = vpack.c.b16 %v442, %v441
    %v460 = vpack.c.b16 %v444, %v443
    %477 = vmatprep.subr.bf16.mxu0 0
    %478 = vmatpush1.bf16.msra.mxu0 %v445
    %479 = vmatprep.subr.bf16.mxu0 0
    %480 = vmatpush1.bf16.msra.mxu0 %v446
    %481 = vmatprep.subr.bf16.mxu0 0
    %482 = vmatpush1.bf16.msra.mxu0 %v447
    %483 = vmatprep.subr.bf16.mxu0 0
    %484 = vmatpush1.bf16.msra.mxu0 %v448
    %485 = vmatprep.subr.bf16.mxu0 0
    %486 = vmatpush1.bf16.msra.mxu0 %v449
    %487 = vmatprep.subr.bf16.mxu0 0
    %488 = vmatpush1.bf16.msra.mxu0 %v450
    %489 = vmatprep.subr.bf16.mxu0 0
    %490 = vmatpush1.bf16.msra.mxu0 %v451
    %491 = vmatprep.subr.bf16.mxu0 0
    %492 = vmatpush1.bf16.msra.mxu0 %v452
    %493 = vmatprep.subr.bf16.mxu0 0
    %494 = vmatpush1.bf16.msra.mxu0 %v453
    %495 = vmatprep.subr.bf16.mxu0 0
    %496 = vmatpush1.bf16.msra.mxu0 %v454
    %497 = vmatprep.subr.bf16.mxu0 0
    %498 = vmatpush1.bf16.msra.mxu0 %v455
    %499 = vmatprep.subr.bf16.mxu0 0
    %500 = vmatpush1.bf16.msra.mxu0 %v456
    %501 = vmatprep.subr.bf16.mxu0 0
    %502 = vmatpush1.bf16.msra.mxu0 %v457
    %503 = vmatprep.subr.bf16.mxu0 0
    %504 = vmatpush1.bf16.msra.mxu0 %v458
    %505 = vmatprep.subr.bf16.mxu0 0
    %506 = vmatpush1.bf16.msra.mxu0 %v459
    %507 = vmatprep.subr.bf16.mxu0 0
    %508 = vmatpush1.bf16.msra.mxu0 %v460
    %509 = vmatprep.mubr.bf16.mxu0 %v348
    %510 = vmatmul.mubr.bf16.gmra.mrb[0].mxu0 %v347
    %v511 = vpop.f32.mrb[0].mxu0
    %v512 = vadd.f32 0.0, %v511
    %v513 = vpop.f32.mrb[0].mxu0
    %v514 = vpop.f32.mrb[0].mxu0
    %v515 = vpop.f32.mrb[0].mxu0
    %516 = vdwg.mxu0
    %517 = vst [vmem:[#allocation8] sm:$0xff] %v512
    // Predicated region
    $region30: #{tpu_custom_call.1} parent=1 // pred_check
      _
    $region31: #{tpu_custom_call.1} parent=1 // pred_check_branch
      %519 = sbr.rel (0) target = $region33
    $region32: #{tpu_custom_call.1} parent=1 // pred_region
      %s521 = ssub.s32 128, 128
      %522 = vsyncadd [#allocation4], %s521
      %s524 = sshll.u32 [#allocation8], 4
      %s525 = int_to_ptr.vmem [resolvable:$true] %s524
      %527 = dma.vmem_to_hbm [thread:$0]  %s525, 128, %s4, [#allocation4]
    $region33: #{tpu_custom_call.1} parent=1 // pred_fallthru
      _
    // Predicated region
    $region34: #{tpu_custom_call.1} parent=1 // pred_check
      _
    $region35: #{tpu_custom_call.1} parent=1 // pred_check_branch
      %529 = sbr.rel (0) target = $region37
    $region36: #{tpu_custom_call.1} parent=1 // pred_region
      %530 = dma.done [#allocation4], 128
    $region37: #{tpu_custom_call.1} parent=1 // pred_fallthru
      _
    %531 = vsyncpa [#allocation3], 1
    %532 = vsyncpa [#allocation6], 1
    %533 = vsyncpa [#allocation4], 1

</llo_original>
